<compile_context>
chip_gen: v5e
topology: v5e:2x2
jax: 0.10.0
libtpu: 0.0.40
codegen_flags: <defaults>
</compile_context>

<pallas_src>
import functools
import math

import jax
import jax.numpy as jnp
import numpy as np
from jax import lax
from jax.experimental import pallas as pl
from jax.experimental.pallas import tpu as pltpu


def featlayer_kernel(x_ref, mask_ref, w1_ref, b1_ref, w2_ref, b2_ref,
                     w3_ref, b3_ref, o_ref, *, H, W, k):
    """One batch-block per grid step.

    x_ref    : (Cin_pad, M)          lane-major input, M = bn*H*W, mxu_dtype
    mask_ref : (k*k, M)              precomputed 0/1 "same"-padding tap masks
    w1_ref   : (C_pad, k*k*Cin_pad)  conv1 im2col weight matrix (mxu_dtype)
    b1_ref   : (C_pad, 1)            f32
    w2_ref   : (C_pad, k*k*C_pad)    conv2 im2col weight matrix (mxu_dtype)
    b2_ref   : (C_pad, 1)            f32
    w3_ref   : (1, C_pad)            1x1 conv weights (f32)
    b3_ref   : (1, 1)                f32
    o_ref    : (1, M)                lane-dense output (f32)
    """
    M = x_ref.shape[-1]
    p = k // 2
    mxu_dtype = x_ref.dtype

    tap_masks = mask_ref[...]                      # (k*k, M), resident

    def im2col(t):                                 # t: (Cf_pad, M) mxu_dtype
        parts = []
        for dy in range(k):
            for dx in range(k):
                oy, ox = dy - p, dx - p
                d = oy * W + ox
                shifted = t if d == 0 else pltpu.roll(t, (-d) % M, axis=1)
                if not (oy == 0 and ox == 0):
                    # 0/1 mask multiply stays in mxu_dtype (no f32 round-trip).
                    m = tap_masks[dy * k + dx:dy * k + dx + 1, :]
                    shifted = shifted * m
                parts.append(shifted)
        # Parts are sublane-tile aligned -> concat is pure vreg placement.
        return jnp.concatenate(parts, axis=0)

    # ---- conv1 (k x k, same) + ReLU : one fused matmul, f32 accumulate ----
    y1 = jnp.dot(w1_ref[...], im2col(x_ref[...]),
                 preferred_element_type=jnp.float32)
    h1 = jnp.maximum(y1 + b1_ref[...], 0.0)

    # ---- conv2 (k x k, same) + ReLU (cast BEFORE roll/mask/concat) ----
    y2 = jnp.dot(w2_ref[...], im2col(h1.astype(mxu_dtype)),
                 preferred_element_type=jnp.float32)
    h2 = jnp.maximum(y2 + b2_ref[...], 0.0)

    # ---- conv3 (1x1, C -> 1): 1-row MXU matmul, lane-dense store ----
    out = jnp.dot(w3_ref[...], h2, preferred_element_type=jnp.float32)
    out = out + b3_ref[...]
    o_ref[...] = out.astype(o_ref.dtype)


def _round_up(x, m):
    return ((x + m - 1) // m) * m


def _sublane_tile(dtype):
    # f32 -> 8 sublanes per vreg; bf16 -> 16 (sublane-packed).
    return 8 * max(1, 4 // np.dtype(dtype).itemsize)


def _tpu_vmem_capacity_bytes():
    """Physical VMEM per TensorCore: 64 MiB on v7x, 128 MiB on v5e/v6e."""
    try:
        kind = jax.devices()[0].device_kind.lower()
    except Exception:
        kind = ""
    if "v7" in kind or "7x" in kind:
        return 64 * 1024 * 1024
    return 128 * 1024 * 1024


def _make_tap_masks(H, W, k, bn, dtype):
    """0/1 validity mask per (dy, dx) tap, lane-major over bn whole images."""
    HW = H * W
    pix = jnp.arange(bn * HW, dtype=jnp.int32) % HW
    row = pix // W
    col = pix % W
    p = k // 2
    masks = []
    for dy in range(k):
        for dx in range(k):
            oy, ox = dy - p, dx - p
            valid = ((row + oy >= 0) & (row + oy < H) &
                     (col + ox >= 0) & (col + ox < W))
            masks.append(valid)
    return jnp.stack(masks, axis=0).astype(dtype)          # (k*k, bn*HW)


def feat_layer_pallas(x_nchw, params, k, *, mxu_dtype=jnp.bfloat16,
                      lanes_per_block=None):
    w1, b1, w2, b2, w3, b3 = params                        # PyTorch OIHW
    N, Cin, H, W = x_nchw.shape
    C = w1.shape[0]
    HW = H * W
    mbytes = np.dtype(mxu_dtype).itemsize

    # Channel padding to the mxu_dtype sublane tile (8 f32 / 16 bf16).
    tile = _sublane_tile(mxu_dtype)
    Cin_pad = _round_up(Cin, tile)
    C_pad = _round_up(C, tile)

    # --- Block sizing (generation-aware VMEM budget) ------------------------
    vmem_capacity = _tpu_vmem_capacity_bytes()
    vmem_limit = min(100 * 1024 * 1024, (vmem_capacity * 3) // 4)  # 48/96 MiB

    # Per-lane working-set estimate (bytes) for one grid step.
    per_lane = (2 * Cin_pad * mbytes           # x block, double-buffered
                + 2 * k * k * mbytes           # tap masks
                + 2 * 4                        # f32 output block, dbl-buffered
                + k * k * Cin_pad * mbytes     # conv1 im2col slab
                + k * k * C_pad * mbytes       # conv2 im2col slab
                + C_pad * mbytes               # h1 cast to mxu_dtype
                + 4 * C_pad * 4)               # f32 intermediates y1/h1/y2/h2
    max_lanes_vmem = max(128, (vmem_limit // 2) // per_lane)  # ~2x headroom
    if lanes_per_block is None:
        lanes_cap = min(65536, max_lanes_vmem)
    else:
        lanes_cap = min(lanes_per_block, max_lanes_vmem)

    # Images per grid step: fold whole images into the lane (M) axis.
    bn = max(1, min(N, lanes_cap // max(HW, 1)))
    if N >= 2:
        # Guarantee >= 2 "parallel" grid blocks so both v7x TensorCores work.
        bn = min(bn, -(-N // 2))
    # Non-full-extent blocks need bn*HW % 128 == 0 (lane alignment).
    g = 128 // math.gcd(HW, 128)
    bn_aligned = (bn // g) * g
    if bn_aligned > 0:
        bn = bn_aligned
    else:
        # No aligned multi-block partition possible; fall back to one
        # full-extent block (correct, but disables v7x megacore splitting).
        bn = N
    n_blocks = pl.cdiv(N, bn)
    n_pad = n_blocks * bn
    M = bn * HW

    # --- Wrapper-side layout plumbing ---------------------------------------
    # NCHW -> (Cin_pad, n_pad*H*W) lane-major slab already in mxu_dtype (bf16
    # halves the dominant HBM stream; the kernel never re-casts the input).
    x_flat = x_nchw.astype(mxu_dtype).reshape(N, Cin, HW)
    if n_pad != N:
        x_flat = jnp.pad(x_flat, ((0, n_pad - N), (0, 0), (0, 0)))
    x_lane = jnp.transpose(x_flat, (1, 0, 2)).reshape(Cin, n_pad * HW)
    if Cin_pad != Cin:
        x_lane = jnp.pad(x_lane, ((0, Cin_pad - Cin), (0, 0)))

    # Precomputed "same"-padding masks: per-image periodic, so one (k*k, M)
    # array covers every block; constant index_map keeps it VMEM-resident.
    masks = _make_tap_masks(H, W, k, bn, mxu_dtype)

    # Weights as im2col matrices, zero-padded to the padded channel counts:
    # column index = (dy*k + dx) * Cin_pad + ci matches the kernel's concat.
    w1p = jnp.pad(w1, ((0, C_pad - C), (0, Cin_pad - Cin), (0, 0), (0, 0)))
    w2p = jnp.pad(w2, ((0, C_pad - C), (0, C_pad - C), (0, 0), (0, 0)))
    w1_mat = jnp.transpose(w1p, (0, 2, 3, 1)).reshape(
        C_pad, k * k * Cin_pad).astype(mxu_dtype)
    w2_mat = jnp.transpose(w2p, (0, 2, 3, 1)).reshape(
        C_pad, k * k * C_pad).astype(mxu_dtype)
    b1c = jnp.pad(b1, (0, C_pad - C)).reshape(C_pad, 1).astype(jnp.float32)
    b2c = jnp.pad(b2, (0, C_pad - C)).reshape(C_pad, 1).astype(jnp.float32)
    w3row = jnp.pad(w3.reshape(1, C),
                    ((0, 0), (0, C_pad - C))).astype(jnp.float32)
    b3c = b3.reshape(1, 1).astype(jnp.float32)

    kernel = functools.partial(featlayer_kernel, H=H, W=W, k=k)

    flops = 2 * n_pad * HW * (k * k * Cin_pad * C_pad
                              + k * k * C_pad * C_pad + C_pad)
    bytes_accessed = int(x_lane.size * mbytes
                         + masks.size * mbytes
                         + w1_mat.size * mbytes + w2_mat.size * mbytes
                         + (3 * C_pad + 1) * 4
                         + n_pad * HW * 4)

    # NOTE(v5e): if larger blocks expose input DMA at v5e's ~820 GB/s HBM BW,
    # pipeline_mode=pl.Buffered(3) on the x spec is a cheap follow-up.
    out = pl.pallas_call(
        kernel,
        out_shape=jax.ShapeDtypeStruct((1, n_pad * HW), jnp.float32),
        grid_spec=pltpu.PrefetchScalarGridSpec(
            num_scalar_prefetch=0,
            grid=(n_blocks,),
            in_specs=[
                pl.BlockSpec((Cin_pad, M), lambda i: (0, i)),
                pl.BlockSpec((k * k, M), lambda i: (0, 0)),
                pl.BlockSpec((C_pad, k * k * Cin_pad), lambda i: (0, 0)),
                pl.BlockSpec((C_pad, 1), lambda i: (0, 0)),
                pl.BlockSpec((C_pad, k * k * C_pad), lambda i: (0, 0)),
                pl.BlockSpec((C_pad, 1), lambda i: (0, 0)),
                pl.BlockSpec((1, C_pad), lambda i: (0, 0)),
                pl.BlockSpec((1, 1), lambda i: (0, 0)),
            ],
            out_specs=pl.BlockSpec((1, M), lambda i: (0, i)),
        ),
        compiler_params=pltpu.CompilerParams(
            dimension_semantics=("parallel",),
            vmem_limit_bytes=vmem_limit),
        cost_estimate=pl.CostEstimate(
            flops=flops, transcendentals=0, bytes_accessed=bytes_accessed),
    )(x_lane, masks, w1_mat, b1c, w2_mat, b2c, w3row, b3c)

    # Back to PyTorch's NCHW output: (N, 1, H, W).
    out = out.reshape(n_pad, H, W)[:N]
    return out[:, None, :, :]


def feat_layer_ref(x_nchw, params, k):
    """Pure-JAX reference (lax.conv) matching PyTorch semantics."""
    w1, b1, w2, b2, w3, b3 = params

    def conv(x, w, b, pad):
        y = lax.conv_general_dilated(
            x, w, window_strides=(1, 1),
            padding=[(pad, pad), (pad, pad)],
            dimension_numbers=("NCHW", "OIHW", "NCHW"))
        return y + b.reshape(1, -1, 1, 1)

    h1 = jax.nn.relu(conv(x_nchw, w1, b1, k // 2))
    h2 = jax.nn.relu(conv(h1, w2, b2, k // 2))
    return conv(h2, w3, b3, 0)


def init_params(key, in_channel, channel, k):
    ks = jax.random.split(key, 6)
    s1 = (in_channel * k * k) ** -0.5
    s2 = (channel * k * k) ** -0.5
    s3 = channel ** -0.5
    # PyTorch OIHW layout.
    w1 = jax.random.normal(ks[0], (channel, in_channel, k, k), jnp.float32) * s1
    b1 = jax.random.normal(ks[1], (channel,), jnp.float32) * s1
    w2 = jax.random.normal(ks[2], (channel, channel, k, k), jnp.float32) * s2
    b2 = jax.random.normal(ks[3], (channel,), jnp.float32) * s2
    w3 = jax.random.normal(ks[4], (1, channel, 1, 1), jnp.float32) * s3
    b3 = jax.random.normal(ks[5], (1,), jnp.float32) * s3
    return (w1, b1, w2, b2, w3, b3)


if __name__ == "__main__":
    key = jax.random.PRNGKey(0)
    k_x, k_p = jax.random.split(key)

    N, in_channel, H, W = 2, 4, 16, 16
    channel, ksize = 8, 3

    x = jax.random.normal(k_x, (N, in_channel, H, W), jnp.float32)
    params = init_params(k_p, in_channel, channel, ksize)

    ref = feat_layer_ref(x, params, ksize)

    # f32 MXU operands: tight check of the layout / roll / mask / pad logic.
    out_f32 = jax.block_until_ready(
        feat_layer_pallas(x, params, ksize, mxu_dtype=jnp.float32))
    assert out_f32.shape == (N, 1, H, W), out_f32.shape
    assert jnp.allclose(out_f32, ref, atol=1e-3, rtol=1e-3), \
        f"f32 max abs err = {jnp.max(jnp.abs(out_f32 - ref))}"

    # Fast path: bf16 everywhere the rolls / masks / matmuls touch, f32 accum.
    out_bf16 = jax.block_until_ready(feat_layer_pallas(x, params, ksize))
    assert out_bf16.shape == (N, 1, H, W), out_bf16.shape
    assert jnp.allclose(out_bf16, ref, atol=5e-2, rtol=5e-2), \
        f"bf16 max abs err = {jnp.max(jnp.abs(out_bf16 - ref))}"

    print("KERNEL_OK")
</pallas_src>

<mosaic_0001>
module attributes {stable_mosaic.version = 11 : i64} {
  func.func @featlayer_kernel(%arg0: i32, %arg1: memref<8x256xf32, #tpu.memory_space<vmem>>, %arg2: memref<9x256xf32, #tpu.memory_space<vmem>>, %arg3: memref<8x72xf32, #tpu.memory_space<vmem>>, %arg4: memref<8x1xf32, #tpu.memory_space<vmem>>, %arg5: memref<8x72xf32, #tpu.memory_space<vmem>>, %arg6: memref<8x1xf32, #tpu.memory_space<vmem>>, %arg7: memref<1x8xf32, #tpu.memory_space<vmem>>, %arg8: memref<1x1xf32, #tpu.memory_space<vmem>>, %arg9: memref<1x256xf32, #tpu.memory_space<vmem>>) attributes {dimension_semantics = [#tpu.dimension_semantics<parallel>], iteration_bounds = array<i64: 2>, scalar_prefetch = 0 : i64, scratch_operands = 0 : i64, tpu.core_type = #tpu.core_type<tc>, window_params = [{transform_indices = @transform_0, window_bounds = array<i64: 8, 256>}, {pipeline_mode = #tpu.pipeline_mode<synchronous>, transform_indices = @transform_1, window_bounds = array<i64: 9, 256>}, {pipeline_mode = #tpu.pipeline_mode<synchronous>, transform_indices = @transform_2, window_bounds = array<i64: 8, 72>}, {pipeline_mode = #tpu.pipeline_mode<synchronous>, transform_indices = @transform_3, window_bounds = array<i64: 8, 1>}, {pipeline_mode = #tpu.pipeline_mode<synchronous>, transform_indices = @transform_4, window_bounds = array<i64: 8, 72>}, {pipeline_mode = #tpu.pipeline_mode<synchronous>, transform_indices = @transform_5, window_bounds = array<i64: 8, 1>}, {pipeline_mode = #tpu.pipeline_mode<synchronous>, transform_indices = @transform_6, window_bounds = array<i64: 1, 8>}, {pipeline_mode = #tpu.pipeline_mode<synchronous>, transform_indices = @transform_7, window_bounds = array<i64: 1, 1>}, {transform_indices = @transform_8, window_bounds = array<i64: 1, 256>}]} {
    %c0 = arith.constant 0 : index
    %c0_0 = arith.constant 0 : index
    %0 = vector.load %arg2[%c0, %c0_0] : memref<9x256xf32, #tpu.memory_space<vmem>>, vector<9x256xf32>
    %c0_1 = arith.constant 0 : index
    %c0_2 = arith.constant 0 : index
    %1 = vector.load %arg3[%c0_1, %c0_2] : memref<8x72xf32, #tpu.memory_space<vmem>>, vector<8x72xf32>
    %c0_3 = arith.constant 0 : index
    %c0_4 = arith.constant 0 : index
    %2 = vector.load %arg1[%c0_3, %c0_4] : memref<8x256xf32, #tpu.memory_space<vmem>>, vector<8x256xf32>
    %c17_i32 = arith.constant 17 : i32
    %3 = tpu.dynamic_rotate %2 by %c17_i32 dim 1 : vector<8x256xf32>, i32 -> vector<8x256xf32>
    %4 = vector.extract_strided_slice %0 {offsets = [0, 0], sizes = [1, 256], strides = [1, 1]} : vector<9x256xf32> to vector<1x256xf32>
    %5 = vector.broadcast %4 : vector<1x256xf32> to vector<8x256xf32>
    %6 = arith.mulf %3, %5 : vector<8x256xf32>
    %c16_i32 = arith.constant 16 : i32
    %7 = tpu.dynamic_rotate %2 by %c16_i32 dim 1 : vector<8x256xf32>, i32 -> vector<8x256xf32>
    %8 = vector.extract_strided_slice %0 {offsets = [1, 0], sizes = [1, 256], strides = [1, 1]} : vector<9x256xf32> to vector<1x256xf32>
    %9 = vector.broadcast %8 : vector<1x256xf32> to vector<8x256xf32>
    %10 = arith.mulf %7, %9 : vector<8x256xf32>
    %c15_i32 = arith.constant 15 : i32
    %11 = tpu.dynamic_rotate %2 by %c15_i32 dim 1 : vector<8x256xf32>, i32 -> vector<8x256xf32>
    %12 = vector.extract_strided_slice %0 {offsets = [2, 0], sizes = [1, 256], strides = [1, 1]} : vector<9x256xf32> to vector<1x256xf32>
    %13 = vector.broadcast %12 : vector<1x256xf32> to vector<8x256xf32>
    %14 = arith.mulf %11, %13 : vector<8x256xf32>
    %c1_i32 = arith.constant 1 : i32
    %15 = tpu.dynamic_rotate %2 by %c1_i32 dim 1 : vector<8x256xf32>, i32 -> vector<8x256xf32>
    %16 = vector.extract_strided_slice %0 {offsets = [3, 0], sizes = [1, 256], strides = [1, 1]} : vector<9x256xf32> to vector<1x256xf32>
    %17 = vector.broadcast %16 : vector<1x256xf32> to vector<8x256xf32>
    %18 = arith.mulf %15, %17 : vector<8x256xf32>
    %c255_i32 = arith.constant 255 : i32
    %19 = tpu.dynamic_rotate %2 by %c255_i32 dim 1 : vector<8x256xf32>, i32 -> vector<8x256xf32>
    %20 = vector.extract_strided_slice %0 {offsets = [5, 0], sizes = [1, 256], strides = [1, 1]} : vector<9x256xf32> to vector<1x256xf32>
    %21 = vector.broadcast %20 : vector<1x256xf32> to vector<8x256xf32>
    %22 = arith.mulf %19, %21 : vector<8x256xf32>
    %c241_i32 = arith.constant 241 : i32
    %23 = tpu.dynamic_rotate %2 by %c241_i32 dim 1 : vector<8x256xf32>, i32 -> vector<8x256xf32>
    %24 = vector.extract_strided_slice %0 {offsets = [6, 0], sizes = [1, 256], strides = [1, 1]} : vector<9x256xf32> to vector<1x256xf32>
    %25 = vector.broadcast %24 : vector<1x256xf32> to vector<8x256xf32>
    %26 = arith.mulf %23, %25 : vector<8x256xf32>
    %c240_i32 = arith.constant 240 : i32
    %27 = tpu.dynamic_rotate %2 by %c240_i32 dim 1 : vector<8x256xf32>, i32 -> vector<8x256xf32>
    %28 = vector.extract_strided_slice %0 {offsets = [7, 0], sizes = [1, 256], strides = [1, 1]} : vector<9x256xf32> to vector<1x256xf32>
    %29 = vector.broadcast %28 : vector<1x256xf32> to vector<8x256xf32>
    %30 = arith.mulf %27, %29 : vector<8x256xf32>
    %c239_i32 = arith.constant 239 : i32
    %31 = tpu.dynamic_rotate %2 by %c239_i32 dim 1 : vector<8x256xf32>, i32 -> vector<8x256xf32>
    %32 = vector.extract_strided_slice %0 {offsets = [8, 0], sizes = [1, 256], strides = [1, 1]} : vector<9x256xf32> to vector<1x256xf32>
    %33 = vector.broadcast %32 : vector<1x256xf32> to vector<8x256xf32>
    %34 = arith.mulf %31, %33 : vector<8x256xf32>
    %35 = tpu.concatenate %6, %10, %14, %18, %2, %22, %26, %30, %34 in 0 : vector<8x256xf32>, vector<8x256xf32>, vector<8x256xf32>, vector<8x256xf32>, vector<8x256xf32>, vector<8x256xf32>, vector<8x256xf32>, vector<8x256xf32>, vector<8x256xf32> -> vector<72x256xf32>
    %cst = arith.constant dense<0.000000e+00> : vector<8x256xf32>
    %36 = tpu.matmul %1, %35, %cst {dimension_numbers = #tpu.dot_dimension_numbers<[1], [0], [0], [1], [0, 0, 1, 1], [], []>} : vector<8x72xf32>, vector<72x256xf32>, vector<8x256xf32> -> vector<8x256xf32>
    %c0_5 = arith.constant 0 : index
    %c0_6 = arith.constant 0 : index
    %37 = vector.load %arg4[%c0_5, %c0_6] : memref<8x1xf32, #tpu.memory_space<vmem>>, vector<8x1xf32>
    %38 = vector.broadcast %37 : vector<8x1xf32> to vector<8x256xf32>
    %39 = arith.addf %36, %38 : vector<8x256xf32>
    %cst_7 = arith.constant 0.000000e+00 : f32
    %40 = vector.broadcast %cst_7 : f32 to vector<8x256xf32>
    %41 = arith.maximumf %39, %40 : vector<8x256xf32>
    %c0_8 = arith.constant 0 : index
    %c0_9 = arith.constant 0 : index
    %42 = vector.load %arg5[%c0_8, %c0_9] : memref<8x72xf32, #tpu.memory_space<vmem>>, vector<8x72xf32>
    %c17_i32_10 = arith.constant 17 : i32
    %43 = tpu.dynamic_rotate %41 by %c17_i32_10 dim 1 : vector<8x256xf32>, i32 -> vector<8x256xf32>
    %44 = vector.extract_strided_slice %0 {offsets = [0, 0], sizes = [1, 256], strides = [1, 1]} : vector<9x256xf32> to vector<1x256xf32>
    %45 = vector.broadcast %44 : vector<1x256xf32> to vector<8x256xf32>
    %46 = arith.mulf %43, %45 : vector<8x256xf32>
    %c16_i32_11 = arith.constant 16 : i32
    %47 = tpu.dynamic_rotate %41 by %c16_i32_11 dim 1 : vector<8x256xf32>, i32 -> vector<8x256xf32>
    %48 = vector.extract_strided_slice %0 {offsets = [1, 0], sizes = [1, 256], strides = [1, 1]} : vector<9x256xf32> to vector<1x256xf32>
    %49 = vector.broadcast %48 : vector<1x256xf32> to vector<8x256xf32>
    %50 = arith.mulf %47, %49 : vector<8x256xf32>
    %c15_i32_12 = arith.constant 15 : i32
    %51 = tpu.dynamic_rotate %41 by %c15_i32_12 dim 1 : vector<8x256xf32>, i32 -> vector<8x256xf32>
    %52 = vector.extract_strided_slice %0 {offsets = [2, 0], sizes = [1, 256], strides = [1, 1]} : vector<9x256xf32> to vector<1x256xf32>
    %53 = vector.broadcast %52 : vector<1x256xf32> to vector<8x256xf32>
    %54 = arith.mulf %51, %53 : vector<8x256xf32>
    %c1_i32_13 = arith.constant 1 : i32
    %55 = tpu.dynamic_rotate %41 by %c1_i32_13 dim 1 : vector<8x256xf32>, i32 -> vector<8x256xf32>
    %56 = vector.extract_strided_slice %0 {offsets = [3, 0], sizes = [1, 256], strides = [1, 1]} : vector<9x256xf32> to vector<1x256xf32>
    %57 = vector.broadcast %56 : vector<1x256xf32> to vector<8x256xf32>
    %58 = arith.mulf %55, %57 : vector<8x256xf32>
    %c255_i32_14 = arith.constant 255 : i32
    %59 = tpu.dynamic_rotate %41 by %c255_i32_14 dim 1 : vector<8x256xf32>, i32 -> vector<8x256xf32>
    %60 = vector.extract_strided_slice %0 {offsets = [5, 0], sizes = [1, 256], strides = [1, 1]} : vector<9x256xf32> to vector<1x256xf32>
    %61 = vector.broadcast %60 : vector<1x256xf32> to vector<8x256xf32>
    %62 = arith.mulf %59, %61 : vector<8x256xf32>
    %c241_i32_15 = arith.constant 241 : i32
    %63 = tpu.dynamic_rotate %41 by %c241_i32_15 dim 1 : vector<8x256xf32>, i32 -> vector<8x256xf32>
    %64 = vector.extract_strided_slice %0 {offsets = [6, 0], sizes = [1, 256], strides = [1, 1]} : vector<9x256xf32> to vector<1x256xf32>
    %65 = vector.broadcast %64 : vector<1x256xf32> to vector<8x256xf32>
    %66 = arith.mulf %63, %65 : vector<8x256xf32>
    %c240_i32_16 = arith.constant 240 : i32
    %67 = tpu.dynamic_rotate %41 by %c240_i32_16 dim 1 : vector<8x256xf32>, i32 -> vector<8x256xf32>
    %68 = vector.extract_strided_slice %0 {offsets = [7, 0], sizes = [1, 256], strides = [1, 1]} : vector<9x256xf32> to vector<1x256xf32>
    %69 = vector.broadcast %68 : vector<1x256xf32> to vector<8x256xf32>
    %70 = arith.mulf %67, %69 : vector<8x256xf32>
    %c239_i32_17 = arith.constant 239 : i32
    %71 = tpu.dynamic_rotate %41 by %c239_i32_17 dim 1 : vector<8x256xf32>, i32 -> vector<8x256xf32>
    %72 = vector.extract_strided_slice %0 {offsets = [8, 0], sizes = [1, 256], strides = [1, 1]} : vector<9x256xf32> to vector<1x256xf32>
    %73 = vector.broadcast %72 : vector<1x256xf32> to vector<8x256xf32>
    %74 = arith.mulf %71, %73 : vector<8x256xf32>
    %75 = tpu.concatenate %46, %50, %54, %58, %41, %62, %66, %70, %74 in 0 : vector<8x256xf32>, vector<8x256xf32>, vector<8x256xf32>, vector<8x256xf32>, vector<8x256xf32>, vector<8x256xf32>, vector<8x256xf32>, vector<8x256xf32>, vector<8x256xf32> -> vector<72x256xf32>
    %cst_18 = arith.constant dense<0.000000e+00> : vector<8x256xf32>
    %76 = tpu.matmul %42, %75, %cst_18 {dimension_numbers = #tpu.dot_dimension_numbers<[1], [0], [0], [1], [0, 0, 1, 1], [], []>} : vector<8x72xf32>, vector<72x256xf32>, vector<8x256xf32> -> vector<8x256xf32>
    %c0_19 = arith.constant 0 : index
    %c0_20 = arith.constant 0 : index
    %77 = vector.load %arg6[%c0_19, %c0_20] : memref<8x1xf32, #tpu.memory_space<vmem>>, vector<8x1xf32>
    %78 = vector.broadcast %77 : vector<8x1xf32> to vector<8x256xf32>
    %79 = arith.addf %76, %78 : vector<8x256xf32>
    %cst_21 = arith.constant 0.000000e+00 : f32
    %80 = vector.broadcast %cst_21 : f32 to vector<8x256xf32>
    %81 = arith.maximumf %79, %80 : vector<8x256xf32>
    %c0_22 = arith.constant 0 : index
    %c0_23 = arith.constant 0 : index
    %82 = vector.load %arg7[%c0_22, %c0_23] : memref<1x8xf32, #tpu.memory_space<vmem>>, vector<1x8xf32>
    %cst_24 = arith.constant dense<0.000000e+00> : vector<1x256xf32>
    %83 = tpu.matmul %82, %81, %cst_24 {dimension_numbers = #tpu.dot_dimension_numbers<[1], [0], [0], [1], [0, 0, 1, 1], [], []>} : vector<1x8xf32>, vector<8x256xf32>, vector<1x256xf32> -> vector<1x256xf32>
    %c0_25 = arith.constant 0 : index
    %c0_26 = arith.constant 0 : index
    %84 = vector.load %arg8[%c0_25, %c0_26] : memref<1x1xf32, #tpu.memory_space<vmem>>, vector<1x1xf32>
    %85 = vector.broadcast %84 : vector<1x1xf32> to vector<1x256xf32>
    %86 = arith.addf %83, %85 : vector<1x256xf32>
    %c0_27 = arith.constant 0 : index
    %c0_28 = arith.constant 0 : index
    %87 = vector.load %arg9[%c0_27, %c0_28] : memref<1x256xf32, #tpu.memory_space<vmem>>, vector<1x256xf32>
    tpu.vector_store %arg9[%c0_27, %c0_28], %86 {strides = array<i32>} : memref<1x256xf32, #tpu.memory_space<vmem>>, vector<1x256xf32>,
    return
  }
  func.func @transform_0(%arg0: i32) -> (i32, i32) {
    %c0_i32 = arith.constant 0 : i32
    %c0_i32_0 = arith.constant 0 : i32
    return %c0_i32, %arg0 : i32, i32
  }
  func.func @transform_1(%arg0: i32) -> (i32, i32) {
    %c0_i32 = arith.constant 0 : i32
    %c0_i32_0 = arith.constant 0 : i32
    %c0_i32_1 = arith.constant 0 : i32
    return %c0_i32, %c0_i32_0 : i32, i32
  }
  func.func @transform_2(%arg0: i32) -> (i32, i32) {
    %c0_i32 = arith.constant 0 : i32
    %c0_i32_0 = arith.constant 0 : i32
    %c0_i32_1 = arith.constant 0 : i32
    return %c0_i32, %c0_i32_0 : i32, i32
  }
  func.func @transform_3(%arg0: i32) -> (i32, i32) {
    %c0_i32 = arith.constant 0 : i32
    %c0_i32_0 = arith.constant 0 : i32
    %c0_i32_1 = arith.constant 0 : i32
    return %c0_i32, %c0_i32_0 : i32, i32
  }
  func.func @transform_4(%arg0: i32) -> (i32, i32) {
    %c0_i32 = arith.constant 0 : i32
    %c0_i32_0 = arith.constant 0 : i32
    %c0_i32_1 = arith.constant 0 : i32
    return %c0_i32, %c0_i32_0 : i32, i32
  }
  func.func @transform_5(%arg0: i32) -> (i32, i32) {
    %c0_i32 = arith.constant 0 : i32
    %c0_i32_0 = arith.constant 0 : i32
    %c0_i32_1 = arith.constant 0 : i32
    return %c0_i32, %c0_i32_0 : i32, i32
  }
  func.func @transform_6(%arg0: i32) -> (i32, i32) {
    %c0_i32 = arith.constant 0 : i32
    %c0_i32_0 = arith.constant 0 : i32
    %c0_i32_1 = arith.constant 0 : i32
    return %c0_i32, %c0_i32_0 : i32, i32
  }
  func.func @transform_7(%arg0: i32) -> (i32, i32) {
    %c0_i32 = arith.constant 0 : i32
    %c0_i32_0 = arith.constant 0 : i32
    %c0_i32_1 = arith.constant 0 : i32
    return %c0_i32, %c0_i32_0 : i32, i32
  }
  func.func @transform_8(%arg0: i32) -> (i32, i32) {
    %c0_i32 = arith.constant 0 : i32
    %c0_i32_0 = arith.constant 0 : i32
    return %c0_i32, %arg0 : i32, i32
  }
}

</mosaic_0001>

<llo_original>
// kernel: tpu_custom_call.1
$region0: #{tpu_custom_call.1}
  #allocation0 [shape = 'u32[]', space=smem, size = 0x4, offset = 0x4, fixed_abs, tag = 'smem constant byte address 0x4 - core index']
  #allocation1 [shape = 'u32[72,128]{1,0:T(1,128)}', space=vmem, size = 0x9000, scoped, tag = 'internal scratch']
  #allocation2 [shape = 'f32[1,1]{1,0:T(1,128)S(1)}', space=vmem, size = 0x200, scoped, tag = 'scoped memory for tpu_custom_call.1']
  %s0 = inlined_call_operand.hbm [shape: f32[8,512], index: 0, kind: input, shape index: {}]
  %s1 = inlined_call_operand.hbm [shape: f32[9,256], index: 1, kind: input, shape index: {}]
  %s2 = inlined_call_operand.vmem [shape: f32[8,72], index: 2, kind: input, shape index: {}]
  %s3 = inlined_call_operand.vmem [shape: f32[8,1], index: 3, kind: input, shape index: {}]
  %s4 = inlined_call_operand.vmem [shape: f32[8,72], index: 4, kind: input, shape index: {}]
  %s5 = inlined_call_operand.vmem [shape: f32[8,1], index: 5, kind: input, shape index: {}]
  %s6 = inlined_call_operand.vmem [shape: f32[1,8], index: 6, kind: input, shape index: {}]
  %s7 = inlined_call_operand.<no memory space> [shape: f32[1,1], index: 7, kind: input, shape index: {}]
  %s8 = inlined_call_operand.hbm [shape: f32[1,512], index: 8, kind: output, shape index: {}]
  %s9 = sld [smem:[#allocation0]]
  $region73: #{tpu_custom_call.1} parent=0
    _
  %s11 = ssub.s32 1, %s9
  %s12 = scalar_select 0, %s11, %s9
  %v13 = vstv %s7
  %14 = vst [vmem:[#allocation2] sm:$0x1] %v13
  $region1: #{tpu_custom_call.1} parent=0
    #allocation3 [shape = 'u8[16384]{0}', space=vmem, size = 0x4000, scoped, tag = 'input window, operand 0']
    #allocation4 [shape = 's32[2]{0}', space=sflag, size = 0x8, scoped, tag = 'scoped memory for tpu_custom_call.1']
    #allocation5 [shape = 's32[2]{0}', space=sflag, size = 0x8, scoped, tag = 'scoped memory for tpu_custom_call.1']
    #allocation6 [shape = 'u8[16384]{0}', space=vmem, size = 0x4000, scoped, tag = 'input window, operand 1, single buffered']
    #allocation7 [shape = 's32[1]{0}', space=sflag, size = 0x4, scoped, tag = 'scoped memory for tpu_custom_call.1']
    #allocation8 [shape = 'u8[2048]{0}', space=vmem, size = 0x800, scoped, tag = 'output window, operand 0']
    %15 = vsyncpa [#allocation4], 0
    %s16 = scalar_lea.sflag [#allocation4], 1
    %17 = vsyncpa %s16, 0
    %18 = vsyncpa [#allocation7], 0
    %19 = vsyncpa [#allocation5], 0
    %s20 = scalar_lea.sflag [#allocation5], 1
    %21 = vsyncpa %s20, 0
    loop: start=0, step=1, limit=4
    $region2: #{tpu_custom_call.1} parent=1 // loop_pre_header
      _
    $region3: #{tpu_custom_call.1} parent=1 // loop_header
      %s23 = sphi 0, %s27
      %p24 = scmp.ge.s32.totalorder %s23, 4
      %s33 = sphi 0, %s35
      %s36 = sphi 0, %s33
      %s37 = sphi 0, %s36
      %s53 = sphi 0, %s37
      %s57 = sphi 0, %s57
      %s59 = sphi 0, %s57
      %s60 = sphi 0, %s59
      %s74 = sphi 0, %s60
      %s78 = sphi 0, %s78
      %s80 = sphi 0, %s78
      %s81 = sphi 0, %s80
      %s95 = sphi 0, %s81
      %s99 = sphi 0, %s99
      %s101 = sphi 0, %s99
      %s102 = sphi 0, %s101
      %s116 = sphi 0, %s102
      %s120 = sphi 0, %s120
      %s122 = sphi 0, %s120
      %s123 = sphi 0, %s122
      %s137 = sphi 0, %s123
      %s141 = sphi 0, %s141
      %s143 = sphi 0, %s141
      %s144 = sphi 0, %s143
      %s158 = sphi 0, %s144
      %s162 = sphi 0, %s162
      %s164 = sphi 0, %s162
      %s165 = sphi 0, %s164
      %s179 = sphi 0, %s165
      %s183 = sphi 0, %s183
      %s185 = sphi 0, %s183
      %s186 = sphi 0, %s185
      %s200 = sphi 0, %s186
      %s206 = sphi 0, %s208
      %s209 = sphi 0, %s206
      %s210 = sphi 0, %s209
      %s226 = sphi 0, %s210
    $region4: #{tpu_custom_call.1} parent=1 // loop_header_branch
      %26 = sbr.rel (%p24) target = $region8
    $region5: #{tpu_custom_call.1} parent=1 // loop_body
      %s28 = ssub.s32 %s23, 1
      %s29 = ssub.s32 %s23, 2
      %s30 = sadd.s32 %s23, 1
      %s31 = ssub.s32 %s23, %s30
      %p32 = scmp.eq.s32.totalorder %s31, 0
      %s34 = sadd.s32 %s33, 1
      %s35 = scalar_select %p32, %s33, %s34
      %p38 = pneg %p32
      %p39 = scmp.eq.s32.totalorder %s23, 1
      %p40 = por %p38, %p39
      %p41 = scmp.ne.s32.totalorder %s33, %s36
      %p42 = scmp.eq.s32.totalorder %s23, 0
      %p43 = por %p41, %p42
      %p44 = scmp.ne.s32.totalorder %s33, %s36
      %p45 = scmp.eq.s32.totalorder %s28, 1
      %p46 = por %p44, %p45
      %p47 = scmp.ne.s32.totalorder %s36, %s37
      %p48 = scmp.eq.s32.totalorder %s28, 0
      %p49 = por %p47, %p48
      %p50 = scmp.ne.s32.totalorder %s36, %s37
      %p51 = scmp.eq.s32.totalorder %s29, 1
      %p52 = por %p50, %p51
      %p54 = scmp.ne.s32.totalorder %s37, %s53
      %p55 = scmp.eq.s32.totalorder %s29, 0
      %p56 = por %p54, %p55
      %s58 = sadd.s32 %s57, 1
      %p61 = scmp.eq.s32.totalorder %s23, 1
      %p62 = scmp.ne.s32.totalorder %s57, %s59
      %p63 = scmp.eq.s32.totalorder %s23, 0
      %p64 = por %p62, %p63
      %p65 = scmp.ne.s32.totalorder %s57, %s59
      %p66 = scmp.eq.s32.totalorder %s28, 1
      %p67 = por %p65, %p66
      %p68 = scmp.ne.s32.totalorder %s59, %s60
      %p69 = scmp.eq.s32.totalorder %s28, 0
      %p70 = por %p68, %p69
      %p71 = scmp.ne.s32.totalorder %s59, %s60
      %p72 = scmp.eq.s32.totalorder %s29, 1
      %p73 = por %p71, %p72
      %p75 = scmp.ne.s32.totalorder %s60, %s74
      %p76 = scmp.eq.s32.totalorder %s29, 0
      %p77 = por %p75, %p76
      %s79 = sadd.s32 %s78, 1
      %p82 = scmp.eq.s32.totalorder %s23, 1
      %p83 = scmp.ne.s32.totalorder %s78, %s80
      %p84 = scmp.eq.s32.totalorder %s23, 0
      %p85 = por %p83, %p84
      %p86 = scmp.ne.s32.totalorder %s78, %s80
      %p87 = scmp.eq.s32.totalorder %s28, 1
      %p88 = por %p86, %p87
      %p89 = scmp.ne.s32.totalorder %s80, %s81
      %p90 = scmp.eq.s32.totalorder %s28, 0
      %p91 = por %p89, %p90
      %p92 = scmp.ne.s32.totalorder %s80, %s81
      %p93 = scmp.eq.s32.totalorder %s29, 1
      %p94 = por %p92, %p93
      %p96 = scmp.ne.s32.totalorder %s81, %s95
      %p97 = scmp.eq.s32.totalorder %s29, 0
      %p98 = por %p96, %p97
      %s100 = sadd.s32 %s99, 1
      %p103 = scmp.eq.s32.totalorder %s23, 1
      %p104 = scmp.ne.s32.totalorder %s99, %s101
      %p105 = scmp.eq.s32.totalorder %s23, 0
      %p106 = por %p104, %p105
      %p107 = scmp.ne.s32.totalorder %s99, %s101
      %p108 = scmp.eq.s32.totalorder %s28, 1
      %p109 = por %p107, %p108
      %p110 = scmp.ne.s32.totalorder %s101, %s102
      %p111 = scmp.eq.s32.totalorder %s28, 0
      %p112 = por %p110, %p111
      %p113 = scmp.ne.s32.totalorder %s101, %s102
      %p114 = scmp.eq.s32.totalorder %s29, 1
      %p115 = por %p113, %p114
      %p117 = scmp.ne.s32.totalorder %s102, %s116
      %p118 = scmp.eq.s32.totalorder %s29, 0
      %p119 = por %p117, %p118
      %s121 = sadd.s32 %s120, 1
      %p124 = scmp.eq.s32.totalorder %s23, 1
      %p125 = scmp.ne.s32.totalorder %s120, %s122
      %p126 = scmp.eq.s32.totalorder %s23, 0
      %p127 = por %p125, %p126
      %p128 = scmp.ne.s32.totalorder %s120, %s122
      %p129 = scmp.eq.s32.totalorder %s28, 1
      %p130 = por %p128, %p129
      %p131 = scmp.ne.s32.totalorder %s122, %s123
      %p132 = scmp.eq.s32.totalorder %s28, 0
      %p133 = por %p131, %p132
      %p134 = scmp.ne.s32.totalorder %s122, %s123
      %p135 = scmp.eq.s32.totalorder %s29, 1
      %p136 = por %p134, %p135
      %p138 = scmp.ne.s32.totalorder %s123, %s137
      %p139 = scmp.eq.s32.totalorder %s29, 0
      %p140 = por %p138, %p139
      %s142 = sadd.s32 %s141, 1
      %p145 = scmp.eq.s32.totalorder %s23, 1
      %p146 = scmp.ne.s32.totalorder %s141, %s143
      %p147 = scmp.eq.s32.totalorder %s23, 0
      %p148 = por %p146, %p147
      %p149 = scmp.ne.s32.totalorder %s141, %s143
      %p150 = scmp.eq.s32.totalorder %s28, 1
      %p151 = por %p149, %p150
      %p152 = scmp.ne.s32.totalorder %s143, %s144
      %p153 = scmp.eq.s32.totalorder %s28, 0
      %p154 = por %p152, %p153
      %p155 = scmp.ne.s32.totalorder %s143, %s144
      %p156 = scmp.eq.s32.totalorder %s29, 1
      %p157 = por %p155, %p156
      %p159 = scmp.ne.s32.totalorder %s144, %s158
      %p160 = scmp.eq.s32.totalorder %s29, 0
      %p161 = por %p159, %p160
      %s163 = sadd.s32 %s162, 1
      %p166 = scmp.eq.s32.totalorder %s23, 1
      %p167 = scmp.ne.s32.totalorder %s162, %s164
      %p168 = scmp.eq.s32.totalorder %s23, 0
      %p169 = por %p167, %p168
      %p170 = scmp.ne.s32.totalorder %s162, %s164
      %p171 = scmp.eq.s32.totalorder %s28, 1
      %p172 = por %p170, %p171
      %p173 = scmp.ne.s32.totalorder %s164, %s165
      %p174 = scmp.eq.s32.totalorder %s28, 0
      %p175 = por %p173, %p174
      %p176 = scmp.ne.s32.totalorder %s164, %s165
      %p177 = scmp.eq.s32.totalorder %s29, 1
      %p178 = por %p176, %p177
      %p180 = scmp.ne.s32.totalorder %s165, %s179
      %p181 = scmp.eq.s32.totalorder %s29, 0
      %p182 = por %p180, %p181
      %s184 = sadd.s32 %s183, 1
      %p187 = scmp.eq.s32.totalorder %s23, 1
      %p188 = scmp.ne.s32.totalorder %s183, %s185
      %p189 = scmp.eq.s32.totalorder %s23, 0
      %p190 = por %p188, %p189
      %p191 = scmp.ne.s32.totalorder %s183, %s185
      %p192 = scmp.eq.s32.totalorder %s28, 1
      %p193 = por %p191, %p192
      %p194 = scmp.ne.s32.totalorder %s185, %s186
      %p195 = scmp.eq.s32.totalorder %s28, 0
      %p196 = por %p194, %p195
      %p197 = scmp.ne.s32.totalorder %s185, %s186
      %p198 = scmp.eq.s32.totalorder %s29, 1
      %p199 = por %p197, %p198
      %p201 = scmp.ne.s32.totalorder %s186, %s200
      %p202 = scmp.eq.s32.totalorder %s29, 0
      %p203 = por %p201, %p202
      %s204 = ssub.s32 %s23, %s30
      %p205 = scmp.eq.s32.totalorder %s204, 0
      %s207 = sadd.s32 %s206, 1
      %s208 = scalar_select %p205, %s206, %s207
      %p211 = pneg %p205
      %p212 = scmp.eq.s32.totalorder %s23, 1
      %p213 = por %p211, %p212
      %p214 = scmp.ne.s32.totalorder %s206, %s209
      %p215 = scmp.eq.s32.totalorder %s23, 0
      %p216 = por %p214, %p215
      %p217 = scmp.ne.s32.totalorder %s206, %s209
      %p218 = scmp.eq.s32.totalorder %s28, 1
      %p219 = por %p217, %p218
      %p220 = scmp.ne.s32.totalorder %s209, %s210
      %p221 = scmp.eq.s32.totalorder %s28, 0
      %p222 = por %p220, %p221
      %p223 = scmp.ne.s32.totalorder %s209, %s210
      %p224 = scmp.eq.s32.totalorder %s29, 1
      %p225 = por %p223, %p224
      %p227 = scmp.ne.s32.totalorder %s210, %s226
      %p228 = scmp.eq.s32.totalorder %s29, 0
      %p229 = por %p227, %p228
      %p230 = scmp.le.s32.totalorder 1, %s23
      %p231 = scmp.lt.s32.totalorder %s23, 3
      %p232 = pnand %p230, %p231
      %p233 = pneg %p232
      // Predicated region
      $region9: #{tpu_custom_call.1} parent=5 // pred_check
        _
      $region10: #{tpu_custom_call.1} parent=5 // pred_check_branch
        %235 = sbr.rel (%p232) target = $region12
      $region11: #{tpu_custom_call.1} parent=5 // pred_region
        %s236 = ssub.s32 %s23, 1
        // Predicated region
        $region13: #{tpu_custom_call.1} parent=11 // pred_check
          %p237 = pneg %p70
        $region14: #{tpu_custom_call.1} parent=11 // pred_check_branch
          %239 = sbr.rel (%p237) target = $region16
        $region15: #{tpu_custom_call.1} parent=11 // pred_region
          %241 = vsyncadd [#allocation7], 0
          %s242 = sshll.u32 %s1, 4
          %s243 = int_to_ptr.hbm [resolvable:$true] %s242
          %s244 = sshll.u32 [#allocation6], 4
          %s245 = int_to_ptr.vmem [resolvable:$true] %s244
          %250 = dma.hbm_to_vmem [thread:$0]  %s243, 512, %s245, [#allocation7], 256, 256, 16
        $region16: #{tpu_custom_call.1} parent=11 // pred_fallthru
          _
        // Predicated region
        $region17: #{tpu_custom_call.1} parent=11 // pred_check
          %p251 = pneg %p91
        $region18: #{tpu_custom_call.1} parent=11 // pred_check_branch
          %253 = sbr.rel (%p251) target = $region20
        $region19: #{tpu_custom_call.1} parent=11 // pred_region
          _
        $region20: #{tpu_custom_call.1} parent=11 // pred_fallthru
          _
        // Predicated region
        $region21: #{tpu_custom_call.1} parent=11 // pred_check
          %p254 = pneg %p112
        $region22: #{tpu_custom_call.1} parent=11 // pred_check_branch
          %256 = sbr.rel (%p254) target = $region24
        $region23: #{tpu_custom_call.1} parent=11 // pred_region
          _
        $region24: #{tpu_custom_call.1} parent=11 // pred_fallthru
          _
        // Predicated region
        $region25: #{tpu_custom_call.1} parent=11 // pred_check
          %p257 = pneg %p133
        $region26: #{tpu_custom_call.1} parent=11 // pred_check_branch
          %259 = sbr.rel (%p257) target = $region28
        $region27: #{tpu_custom_call.1} parent=11 // pred_region
          _
        $region28: #{tpu_custom_call.1} parent=11 // pred_fallthru
          _
        // Predicated region
        $region29: #{tpu_custom_call.1} parent=11 // pred_check
          %p260 = pneg %p154
        $region30: #{tpu_custom_call.1} parent=11 // pred_check_branch
          %262 = sbr.rel (%p260) target = $region32
        $region31: #{tpu_custom_call.1} parent=11 // pred_region
          _
        $region32: #{tpu_custom_call.1} parent=11 // pred_fallthru
          _
        // Predicated region
        $region33: #{tpu_custom_call.1} parent=11 // pred_check
          %p263 = pneg %p175
        $region34: #{tpu_custom_call.1} parent=11 // pred_check_branch
          %265 = sbr.rel (%p263) target = $region36
        $region35: #{tpu_custom_call.1} parent=11 // pred_region
          _
        $region36: #{tpu_custom_call.1} parent=11 // pred_fallthru
          _
        // Predicated region
        $region37: #{tpu_custom_call.1} parent=11 // pred_check
          %p266 = pneg %p196
        $region38: #{tpu_custom_call.1} parent=11 // pred_check_branch
          %268 = sbr.rel (%p266) target = $region40
        $region39: #{tpu_custom_call.1} parent=11 // pred_region
          _
        $region40: #{tpu_custom_call.1} parent=11 // pred_fallthru
          _
      $region12: #{tpu_custom_call.1} parent=5 // pred_fallthru
        _
      %p269 = scmp.lt.s32.totalorder %s23, 2
      // Predicated region
      $region41: #{tpu_custom_call.1} parent=5 // pred_check
        %p270 = pneg %p269
      $region42: #{tpu_custom_call.1} parent=5 // pred_check_branch
        %272 = sbr.rel (%p270) target = $region44
      $region43: #{tpu_custom_call.1} parent=5 // pred_region
        // Predicated region
        $region45: #{tpu_custom_call.1} parent=43 // pred_check
          %p273 = pneg %p43
        $region46: #{tpu_custom_call.1} parent=43 // pred_check_branch
          %275 = sbr.rel (%p273) target = $region48
        $region47: #{tpu_custom_call.1} parent=43 // pred_region
          %s276 = sand.u32 %s33, 1
          %s277 = scalar_lea.sflag [#allocation4], %s276
          %s278 = sand.u32 %s33, 1
          %s279 = smul.addr %s278, 16
          %s280 = scalar_lea.vmem [#allocation3], %s279
          %s281 = smul.u32 2, %s23
          %283 = vsyncadd %s277, 0
          %s284 = smul.addr %s281, 8
          %s285 = scalar_lea.hbm %s0, %s284
          %s287 = sshll.u32 %s285, 4
          %s288 = int_to_ptr.hbm [resolvable:$true] %s287
          %s289 = sshll.u32 %s280, 4
          %s290 = int_to_ptr.vmem [resolvable:$true] %s289
          %292 = dma.hbm_to_vmem [thread:$0]  %s288, 256, %s290, %s277
        $region48: #{tpu_custom_call.1} parent=43 // pred_fallthru
          _
      $region44: #{tpu_custom_call.1} parent=5 // pred_fallthru
        _
      %p293 = scmp.le.s32.totalorder 1, %s23
      %p294 = scmp.lt.s32.totalorder %s23, 3
      %p295 = pnand %p293, %p294
      %p296 = pneg %p295
      // Predicated region
      $region49: #{tpu_custom_call.1} parent=5 // pred_check
        _
      $region50: #{tpu_custom_call.1} parent=5 // pred_check_branch
        %298 = sbr.rel (%p295) target = $region52
      $region51: #{tpu_custom_call.1} parent=5 // pred_region
        %s299 = ssub.s32 %s23, 1
        %s300 = sand.u32 %s36, 1
        %s301 = scalar_lea.sflag [#allocation4], %s300
        %s302 = sand.u32 %s36, 1
        %s303 = smul.addr %s302, 16
        %s304 = scalar_lea.vmem [#allocation3], %s303
        // Predicated region
        $region53: #{tpu_custom_call.1} parent=51 // pred_check
          %p305 = pneg %p49
        $region54: #{tpu_custom_call.1} parent=51 // pred_check_branch
          %307 = sbr.rel (%p305) target = $region56
        $region55: #{tpu_custom_call.1} parent=51 // pred_region
          %309 = dma.done %s301, 256
        $region56: #{tpu_custom_call.1} parent=51 // pred_fallthru
          _
        // Predicated region
        $region57: #{tpu_custom_call.1} parent=51 // pred_check
          %p310 = pneg %p70
        $region58: #{tpu_custom_call.1} parent=51 // pred_check_branch
          %312 = sbr.rel (%p310) target = $region60
        $region59: #{tpu_custom_call.1} parent=51 // pred_region
          %314 = dma.done [#allocation7], 512
        $region60: #{tpu_custom_call.1} parent=51 // pred_fallthru
          _
        %s315 = sand.u32 %s36, 1
        %s316 = scalar_lea.sflag [#allocation4], %s315
        %s317 = sand.u32 %s36, 1
        %s318 = smul.addr %s317, 16
        %s319 = scalar_lea.vmem [#allocation3], %s318
        %p320 = pneg %p49
        %p321 = pneg %p46
        %p322 = pneg %p70
        %p323 = pneg %p67
        %p324 = pneg %p91
        %p325 = pneg %p88
        %p326 = pneg %p112
        %p327 = pneg %p109
        %p328 = pneg %p133
        %p329 = pneg %p130
        %p330 = pneg %p154
        %p331 = pneg %p151
        %p332 = pneg %p175
        %p333 = pneg %p172
        %p334 = pneg %p196
        %p335 = pneg %p193
        %p336 = pneg %p222
        %p337 = pneg %p219
        %s338 = sand.u32 %s209, 1
        %s339 = scalar_lea.sflag [#allocation5], %s338
        %s340 = sand.u32 %s209, 1
        %s341 = smul.addr %s340, 2
        %s342 = scalar_lea.vmem [#allocation8], %s341
        %s343 = smul.u32 2, %s28
        %s344 = smul.u32 2, %s28
        %v345 = vld [vmem:[#allocation6] sm:$0xff]
        %v346 = vld [vmem:[#allocation6 + $0x8] sm:$0xff]
        %v347 = vld [vmem:[#allocation6 + $0x10] sm:$0x1]
        %v348 = vld [vmem:[#allocation6 + $0x18] sm:$0x1]
        %v349 = vld [vmem:[%s2] sm:$0xff]
        %v350 = vld [vmem:[%s304] sm:$0xff]
        %v351 = vld [vmem:[%s304 + $0x8] sm:$0xff]
        %352 = vrot.lane.b32.xlu0 %v350, 17
        %v353 = vpop.permute.xlu0 %352
        %354 = vrot.lane.b32.xlu0 %v351, 17
        %v355 = vpop.permute.xlu0 %354
        %v356 = vlaneseq
        %v357 = vand.u32 %v356, 127
        %vm358 = vcmp.lt.s32.totalorder %v357, 17
        %v359 = vsel %vm358, %v353, %v355
        %v360 = vsel %vm358, %v355, %v353
        %v361 = vperm.slane %v345, 0
        %v362 = vperm.slane %v346, 0
        %v363 = vmul.f32 %v360, %v361
        %v364 = vmul.f32 %v359, %v362
        %365 = vrot.lane.b32.xlu0 %v350, 16
        %v366 = vpop.permute.xlu0 %365
        %367 = vrot.lane.b32.xlu0 %v351, 16
        %v368 = vpop.permute.xlu0 %367
        %vm369 = vcmp.lt.s32.totalorder %v357, 16
        %v370 = vsel %vm369, %v366, %v368
        %v371 = vsel %vm369, %v368, %v366
        %v372 = vperm.slane %v345, 1
        %v373 = vperm.slane %v346, 1
        %v374 = vmul.f32 %v371, %v372
        %v375 = vmul.f32 %v370, %v373
        %376 = vrot.lane.b32.xlu0 %v350, 15
        %v377 = vpop.permute.xlu0 %376
        %378 = vrot.lane.b32.xlu0 %v351, 15
        %v379 = vpop.permute.xlu0 %378
        %vm380 = vcmp.lt.s32.totalorder %v357, 15
        %v381 = vsel %vm380, %v377, %v379
        %v382 = vsel %vm380, %v379, %v377
        %v383 = vperm.slane %v345, 2
        %v384 = vperm.slane %v346, 2
        %v385 = vmul.f32 %v382, %v383
        %v386 = vmul.f32 %v381, %v384
        %387 = vrot.lane.b32.xlu0 %v350, 1
        %v388 = vpop.permute.xlu0 %387
        %389 = vrot.lane.b32.xlu0 %v351, 1
        %v390 = vpop.permute.xlu0 %389
        %vm391 = vcmp.lt.s32.totalorder %v357, 1
        %v392 = vsel %vm391, %v388, %v390
        %v393 = vsel %vm391, %v390, %v388
        %v394 = vperm.slane %v345, 3
        %v395 = vperm.slane %v346, 3
        %v396 = vmul.f32 %v393, %v394
        %v397 = vmul.f32 %v392, %v395
        %398 = vrot.lane.b32.xlu0 %v350, 127
        %v399 = vpop.permute.xlu0 %398
        %400 = vrot.lane.b32.xlu0 %v351, 127
        %v401 = vpop.permute.xlu0 %400
        %vm402 = vcmp.lt.s32.totalorder %v357, 127
        %v403 = vsel %vm402, %v399, %v401
        %v404 = vsel %vm402, %v401, %v399
        %v405 = vperm.slane %v345, 5
        %v406 = vperm.slane %v346, 5
        %v407 = vmul.f32 %v403, %v405
        %v408 = vmul.f32 %v404, %v406
        %409 = vrot.lane.b32.xlu0 %v350, 113
        %v410 = vpop.permute.xlu0 %409
        %411 = vrot.lane.b32.xlu0 %v351, 113
        %v412 = vpop.permute.xlu0 %411
        %vm413 = vcmp.lt.s32.totalorder %v357, 113
        %v414 = vsel %vm413, %v410, %v412
        %v415 = vsel %vm413, %v412, %v410
        %v416 = vperm.slane %v345, 6
        %v417 = vperm.slane %v346, 6
        %v418 = vmul.f32 %v414, %v416
        %v419 = vmul.f32 %v415, %v417
        %420 = vrot.lane.b32.xlu0 %v350, 112
        %v421 = vpop.permute.xlu0 %420
        %422 = vrot.lane.b32.xlu0 %v351, 112
        %v423 = vpop.permute.xlu0 %422
        %vm424 = vcmp.lt.s32.totalorder %v357, 112
        %v425 = vsel %vm424, %v421, %v423
        %v426 = vsel %vm424, %v423, %v421
        %v427 = vperm.slane %v345, 7
        %v428 = vperm.slane %v346, 7
        %v429 = vmul.f32 %v425, %v427
        %v430 = vmul.f32 %v426, %v428
        %431 = vrot.lane.b32.xlu0 %v350, 111
        %v432 = vpop.permute.xlu0 %431
        %433 = vrot.lane.b32.xlu0 %v351, 111
        %v434 = vpop.permute.xlu0 %433
        %vm435 = vcmp.lt.s32.totalorder %v357, 111
        %v436 = vsel %vm435, %v432, %v434
        %v437 = vsel %vm435, %v434, %v432
        %v438 = vperm.slane %v347, 0
        %v439 = vperm.slane %v348, 0
        %v440 = vmul.f32 %v436, %v438
        %v441 = vmul.f32 %v437, %v439
        %v442 = vld [vmem:[%s3] sm:$0xff]
        %444 = vset.pattern.permute.xlu0 0
        %445 = vperm.xlu0 %444, %v442
        %v446 = vpop.permute.xlu0 %445
        %vm448 = vcmask 588800
        %v450 = vsel %vm448, %v349, 0
        %452 = vmatpush.msra.mxu0 0.0
        %453 = vmatpush.msra.mxu0 0.0
        %454 = vmatpush.msra.mxu0 0.0
        %455 = vmatpush.msra.mxu0 0.0
        %456 = vmatpush.msra.mxu0 0.0
        %457 = vmatpush.msra.mxu0 0.0
        %458 = vmatpush.msra.mxu0 0.0
        %459 = vmatpush.msra.mxu0 %v440
        %460 = vmatpush.msra.mxu0 %v429
        %461 = vmatpush.msra.mxu0 %v418
        %462 = vmatpush.msra.mxu0 %v407
        %463 = vmatpush.msra.mxu0 %v350
        %464 = vmatpush.msra.mxu0 %v396
        %465 = vmatpush.msra.mxu0 %v385
        %466 = vmatpush.msra.mxu0 %v374
        %467 = vmatpush.msra.mxu0 %v363
        %468 = vmatmul.f32.gmra.mxu0 %v450
        %v469 = vpop.f32.mrf.mxu0
        %v470 = vadd.f32 %v446, %v469
        %471 = vdwg.mxu0
        %472 = vmatpush.msra.mxu0 0.0
        %473 = vmatpush.msra.mxu0 0.0
        %474 = vmatpush.msra.mxu0 0.0
        %475 = vmatpush.msra.mxu0 0.0
        %476 = vmatpush.msra.mxu0 0.0
        %477 = vmatpush.msra.mxu0 0.0
        %478 = vmatpush.msra.mxu0 0.0
        %479 = vmatpush.msra.mxu0 %v441
        %480 = vmatpush.msra.mxu0 %v430
        %481 = vmatpush.msra.mxu0 %v419
        %482 = vmatpush.msra.mxu0 %v408
        %483 = vmatpush.msra.mxu0 %v351
        %484 = vmatpush.msra.mxu0 %v397
        %485 = vmatpush.msra.mxu0 %v386
        %486 = vmatpush.msra.mxu0 %v375
        %487 = vmatpush.msra.mxu0 %v364
        %488 = vmatmul.f32.gmra.mxu0 %v450
        %v489 = vpop.f32.mrf.mxu0
        %v490 = vadd.f32 %v446, %v489
        %491 = vdwg.mxu0
        %v492 = vmax.f32 %v470, 0.0
        %v493 = vmax.f32 %v490, 0.0
        %v494 = vld [vmem:[%s4] sm:$0xff]
        %495 = vrot.lane.b32.xlu0 %v492, 17
        %v496 = vpop.permute.xlu0 %495
        %497 = vrot.lane.b32.xlu0 %v493, 17
        %v498 = vpop.permute.xlu0 %497
        %v499 = vsel %vm358, %v496, %v498
        %v500 = vsel %vm358, %v498, %v496
        %v501 = vmul.f32 %v500, %v361
        %v502 = vmul.f32 %v499, %v362
        %503 = vrot.lane.b32.xlu0 %v492, 16
        %v504 = vpop.permute.xlu0 %503
        %505 = vrot.lane.b32.xlu0 %v493, 16
        %v506 = vpop.permute.xlu0 %505
        %v507 = vsel %vm369, %v504, %v506
        %v508 = vsel %vm369, %v506, %v504
        %v509 = vmul.f32 %v508, %v372
        %v510 = vmul.f32 %v507, %v373
        %511 = vrot.lane.b32.xlu0 %v492, 15
        %v512 = vpop.permute.xlu0 %511
        %513 = vrot.lane.b32.xlu0 %v493, 15
        %v514 = vpop.permute.xlu0 %513
        %v515 = vsel %vm380, %v512, %v514
        %v516 = vsel %vm380, %v514, %v512
        %v517 = vmul.f32 %v516, %v383
        %v518 = vmul.f32 %v515, %v384
        %519 = vrot.lane.b32.xlu0 %v492, 1
        %v520 = vpop.permute.xlu0 %519
        %521 = vrot.lane.b32.xlu0 %v493, 1
        %v522 = vpop.permute.xlu0 %521
        %v523 = vsel %vm391, %v520, %v522
        %v524 = vsel %vm391, %v522, %v520
        %v525 = vmul.f32 %v524, %v394
        %v526 = vmul.f32 %v523, %v395
        %527 = vrot.lane.b32.xlu0 %v492, 127
        %v528 = vpop.permute.xlu0 %527
        %529 = vrot.lane.b32.xlu0 %v493, 127
        %v530 = vpop.permute.xlu0 %529
        %v531 = vsel %vm402, %v528, %v530
        %v532 = vsel %vm402, %v530, %v528
        %v533 = vmul.f32 %v531, %v405
        %v534 = vmul.f32 %v532, %v406
        %535 = vrot.lane.b32.xlu0 %v492, 113
        %v536 = vpop.permute.xlu0 %535
        %537 = vrot.lane.b32.xlu0 %v493, 113
        %v538 = vpop.permute.xlu0 %537
        %v539 = vsel %vm413, %v536, %v538
        %v540 = vsel %vm413, %v538, %v536
        %v541 = vmul.f32 %v539, %v416
        %v542 = vmul.f32 %v540, %v417
        %543 = vrot.lane.b32.xlu0 %v492, 112
        %v544 = vpop.permute.xlu0 %543
        %545 = vrot.lane.b32.xlu0 %v493, 112
        %v546 = vpop.permute.xlu0 %545
        %v547 = vsel %vm424, %v544, %v546
        %v548 = vsel %vm424, %v546, %v544
        %v549 = vmul.f32 %v547, %v427
        %v550 = vmul.f32 %v548, %v428
        %551 = vrot.lane.b32.xlu0 %v492, 111
        %v552 = vpop.permute.xlu0 %551
        %553 = vrot.lane.b32.xlu0 %v493, 111
        %v554 = vpop.permute.xlu0 %553
        %v555 = vsel %vm435, %v552, %v554
        %v556 = vsel %vm435, %v554, %v552
        %v557 = vmul.f32 %v555, %v438
        %v558 = vmul.f32 %v556, %v439
        %v559 = vld [vmem:[%s5] sm:$0xff]
        %561 = vset.pattern.permute.xlu0 0
        %562 = vperm.xlu0 %561, %v559
        %v563 = vpop.permute.xlu0 %562
        %v566 = vsel %vm448, %v494, 0
        %568 = vmatpush.msra.mxu0 0.0
        %569 = vmatpush.msra.mxu0 0.0
        %570 = vmatpush.msra.mxu0 0.0
        %571 = vmatpush.msra.mxu0 0.0
        %572 = vmatpush.msra.mxu0 0.0
        %573 = vmatpush.msra.mxu0 0.0
        %574 = vmatpush.msra.mxu0 0.0
        %575 = vmatpush.msra.mxu0 %v557
        %576 = vmatpush.msra.mxu0 %v549
        %577 = vmatpush.msra.mxu0 %v541
        %578 = vmatpush.msra.mxu0 %v533
        %579 = vmatpush.msra.mxu0 %v492
        %580 = vmatpush.msra.mxu0 %v525
        %581 = vmatpush.msra.mxu0 %v517
        %582 = vmatpush.msra.mxu0 %v509
        %583 = vmatpush.msra.mxu0 %v501
        %584 = vmatmul.f32.gmra.mxu0 %v566
        %v585 = vpop.f32.mrf.mxu0
        %v586 = vadd.f32 %v563, %v585
        %587 = vdwg.mxu0
        %588 = vmatpush.msra.mxu0 0.0
        %589 = vmatpush.msra.mxu0 0.0
        %590 = vmatpush.msra.mxu0 0.0
        %591 = vmatpush.msra.mxu0 0.0
        %592 = vmatpush.msra.mxu0 0.0
        %593 = vmatpush.msra.mxu0 0.0
        %594 = vmatpush.msra.mxu0 0.0
        %595 = vmatpush.msra.mxu0 %v558
        %596 = vmatpush.msra.mxu0 %v550
        %597 = vmatpush.msra.mxu0 %v542
        %598 = vmatpush.msra.mxu0 %v534
        %599 = vmatpush.msra.mxu0 %v493
        %600 = vmatpush.msra.mxu0 %v526
        %601 = vmatpush.msra.mxu0 %v518
        %602 = vmatpush.msra.mxu0 %v510
        %603 = vmatpush.msra.mxu0 %v502
        %604 = vmatmul.f32.gmra.mxu0 %v566
        %v605 = vpop.f32.mrf.mxu0
        %v606 = vadd.f32 %v563, %v605
        %607 = vdwg.mxu0
        %v608 = vmax.f32 %v586, 0.0
        %v609 = vmax.f32 %v606, 0.0
        %v610 = vld [vmem:[%s6] sm:$0x1]
        %v611 = vld [vmem:[#allocation2] sm:$0x1]
        %613 = vset.pattern.permute.xlu0 0
        %614 = vperm.xlu0 %613, %v611
        %v615 = vpop.permute.xlu0 %614
        %v617 = vperm.slane %v615, 0
        %vm618 = vcmask 64512
        %v620 = vsel %vm618, %v610, 0
        %622 = vmatpush.msra.mxu0 0.0
        %623 = vmatpush.msra.mxu0 0.0
        %624 = vmatpush.msra.mxu0 0.0
        %625 = vmatpush.msra.mxu0 0.0
        %626 = vmatpush.msra.mxu0 0.0
        %627 = vmatpush.msra.mxu0 0.0
        %628 = vmatpush.msra.mxu0 0.0
        %629 = vmatpush.msra.mxu0 0.0
        %630 = vmatpush.msra.mxu0 0.0
        %631 = vmatpush.msra.mxu0 0.0
        %632 = vmatpush.msra.mxu0 0.0
        %633 = vmatpush.msra.mxu0 0.0
        %634 = vmatpush.msra.mxu0 0.0
        %635 = vmatpush.msra.mxu0 0.0
        %636 = vmatpush.msra.mxu0 0.0
        %637 = vmatpush.msra.mxu0 %v608
        %638 = vmatmul.f32.gmra.mxu0 %v620
        %v639 = vpop.f32.mrf.mxu0
        %v640 = vadd.f32 %v617, %v639
        %641 = vdwg.mxu0
        %642 = vmatpush.msra.mxu0 0.0
        %643 = vmatpush.msra.mxu0 0.0
        %644 = vmatpush.msra.mxu0 0.0
        %645 = vmatpush.msra.mxu0 0.0
        %646 = vmatpush.msra.mxu0 0.0
        %647 = vmatpush.msra.mxu0 0.0
        %648 = vmatpush.msra.mxu0 0.0
        %649 = vmatpush.msra.mxu0 0.0
        %650 = vmatpush.msra.mxu0 0.0
        %651 = vmatpush.msra.mxu0 0.0
        %652 = vmatpush.msra.mxu0 0.0
        %653 = vmatpush.msra.mxu0 0.0
        %654 = vmatpush.msra.mxu0 0.0
        %655 = vmatpush.msra.mxu0 0.0
        %656 = vmatpush.msra.mxu0 0.0
        %657 = vmatpush.msra.mxu0 %v609
        %658 = vmatmul.f32.gmra.mxu0 %v620
        %v659 = vpop.f32.mrf.mxu0
        %v660 = vadd.f32 %v617, %v659
        %661 = vdwg.mxu0
        %v664 = vrot.slane %v660, 7
        %vm665 = vcmask 1040384
        %v666 = vsel %vm665, %v640, %v664
        %v668 = vlaneseq
        %vm669 = vcmp.ge.s32.totalorder %v668, 0
        %vm670 = vcmp.lt.s32.totalorder %v668, 256
        %vm671 = vmand %vm669, %vm670
        %672 = vst.msk [vmem:[%s342] sm:$0x3] %vm671, %v666
        %s673 = sand.u32 %s209, 1
        %s674 = scalar_lea.sflag [#allocation5], %s673
        %s675 = sand.u32 %s209, 1
        %s676 = smul.addr %s675, 2
        %s677 = scalar_lea.vmem [#allocation8], %s676
        // Predicated region
        $region61: #{tpu_custom_call.1} parent=51 // pred_check
          %p678 = pneg %p219
        $region62: #{tpu_custom_call.1} parent=51 // pred_check_branch
          %680 = sbr.rel (%p678) target = $region64
        $region63: #{tpu_custom_call.1} parent=51 // pred_region
          %s681 = smul.u32 2, %s28
          %683 = vsyncadd %s674, 0
          %s684 = scalar_lea.hbm %s8, %s681
          %s686 = sshll.u32 %s677, 4
          %s687 = int_to_ptr.vmem [resolvable:$true] %s686
          %s688 = sshll.u32 %s684, 4
          %s689 = int_to_ptr.hbm [resolvable:$true] %s688
          %691 = dma.vmem_to_hbm [thread:$0]  %s687, 32, %s689, %s674
        $region64: #{tpu_custom_call.1} parent=51 // pred_fallthru
          _
      $region52: #{tpu_custom_call.1} parent=5 // pred_fallthru
        _
      %p692 = scmp.le.s32.totalorder 2, %s23
      // Predicated region
      $region65: #{tpu_custom_call.1} parent=5 // pred_check
        %p693 = pneg %p692
      $region66: #{tpu_custom_call.1} parent=5 // pred_check_branch
        %695 = sbr.rel (%p693) target = $region68
      $region67: #{tpu_custom_call.1} parent=5 // pred_region
        %s696 = ssub.s32 %s23, 2
        // Predicated region
        $region69: #{tpu_custom_call.1} parent=67 // pred_check
          %p697 = pneg %p225
        $region70: #{tpu_custom_call.1} parent=67 // pred_check_branch
          %699 = sbr.rel (%p697) target = $region72
        $region71: #{tpu_custom_call.1} parent=67 // pred_region
          %s700 = sand.u32 %s210, 1
          %s701 = scalar_lea.sflag [#allocation5], %s700
          %s702 = sand.u32 %s210, 1
          %s703 = smul.addr %s702, 2
          %s704 = scalar_lea.vmem [#allocation8], %s703
          %706 = dma.done %s701, 32
        $region72: #{tpu_custom_call.1} parent=67 // pred_fallthru
          _
      $region68: #{tpu_custom_call.1} parent=5 // pred_fallthru
        _
    $region6: #{tpu_custom_call.1} parent=1 // loop_footer
      %s27 = sadd.s32 1, %s23
    $region7: #{tpu_custom_call.1} parent=1 // loop_footer_branch
      %22 = sbr.rel target = $region3
    $region8: #{tpu_custom_call.1} parent=1 // loop_exit
      _
    %707 = vsyncpa [#allocation4], 1
    %s708 = scalar_lea.sflag [#allocation4], 1
    %709 = vsyncpa %s708, 1
    %710 = vsyncpa [#allocation7], 1
    %711 = vsyncpa [#allocation5], 1
    %s712 = scalar_lea.sflag [#allocation5], 1
    %713 = vsyncpa %s712, 1

</llo_original>
